<compile_context>
chip_gen: v6e
topology: v6e:2x2x1
jax: 0.10.0
libtpu: 0.0.40
codegen_flags: <defaults>
</compile_context>

<pallas_src>
import math

import numpy as np
import jax
import jax.numpy as jnp
from jax.experimental import pallas as pl
from jax.experimental.pallas import tpu as pltpu


def _round_up(x, m):
    return ((x + m - 1) // m) * m


# ---------------- shared f32 sin/cos (one range reduction, two polys) ----------------
# Cody-Waite split of pi/2: HI has 8 significant bits, MID 11, so n*HI and n*MID are
# exact f32 products for |n| <= 2^13 (|x| <~ 1.2e4); accuracy degrades gracefully
# beyond that.  Polynomials are the Cephes single-precision minimax on [-pi/4, pi/4].
_pio2 = np.float64(np.pi) / 2.0
_PIO2_HI = float(np.float32(np.floor(_pio2 * 1024.0 + 0.5) / 1024.0))
_r1 = _pio2 - np.float64(np.float32(_PIO2_HI))
_PIO2_MID = float(np.float32(np.floor(_r1 * (2.0 ** 22) + 0.5) / (2.0 ** 22)))
_PIO2_LO = float(np.float32(_r1 - np.float64(np.float32(_PIO2_MID))))
_TWO_OVER_PI = float(np.float32(2.0 / np.pi))


def _sincos_f32(x):
    """(sin(x), cos(x)) for f32 x with a single shared range reduction.

    Used both inside the Pallas kernels and in the pure-JAX reference so the
    kernel/reference comparison is implementation-stable (unlike jnp.sin, whose
    Mosaic and XLA lowerings differ for large arguments)."""
    n = jnp.floor(x * _TWO_OVER_PI + 0.5)
    r = ((x - n * _PIO2_HI) - n * _PIO2_MID) - n * _PIO2_LO
    q = n.astype(jnp.int32)
    r2 = r * r
    sin_p = r + r * r2 * (-1.6666654611e-01
                          + r2 * (8.3321608736e-03 + r2 * (-1.9515295891e-04)))
    cos_p = 1.0 + r2 * (-0.5
                        + r2 * (4.166664568298827e-02
                                + r2 * (-1.388731625493765e-03
                                        + r2 * 2.443315711809948e-05)))
    swap = (q & 1) == 1
    sin_v = jnp.where(swap, cos_p, sin_p)
    cos_v = jnp.where(swap, sin_p, cos_p)
    sin_v = jnp.where((q & 2) == 2, -sin_v, sin_v)
    cos_v = jnp.where(((q + 1) & 2) == 2, -cos_v, cos_v)
    return sin_v, cos_v


# ------------------------- Pallas kernels -------------------------

def _ffn_kernel(coords_ref, sel_ref, freq_ref, w_sin_ref, w_cos_ref, b_ref, out_ref):
    # coords_ref: (TMp, P*C)      P packed points per row
    # sel_ref:    (P*C, P*C*F)    one-hot coord -> grouped angle-slot expansion (exact)
    # freq_ref:   (1, P*C*F)      per-slot frequency
    # w_sin_ref:  (P*C*F, P*D)    block-diag FFN weight rows for the sin terms
    # w_cos_ref:  (P*C*F, P*D)    block-diag FFN weight rows for the cos terms
    # b_ref:      (1, P*D)        FFN bias tiled P times
    # out_ref:    (TMp, P*D)      packed sprenc output (lane-dense, 128-multiple)
    ang = jnp.dot(coords_ref[...], sel_ref[...],
                  preferred_element_type=jnp.float32) * freq_ref[...]
    s, c = _sincos_f32(ang)                       # one shared range reduction
    h = (jnp.dot(s, w_sin_ref[...], preferred_element_type=jnp.float32)
         + jnp.dot(c, w_cos_ref[...], preferred_element_type=jnp.float32)
         + b_ref[...])
    out_ref[...] = jnp.maximum(h, 0.0)            # ReLU


def _emb_kernel(coords_ref, sel_ref, freq_ref, cosmask_ref, emb_ref):
    # Raw sinusoidal embedding (ffn=None path); interleaved sin/cos layout.
    # coords_ref: (TMp, P*C); sel_ref: (P*C, P*E0); freq/cosmask: (1, P*E0)
    ang = jnp.dot(coords_ref[...], sel_ref[...],
                  preferred_element_type=jnp.float32) * freq_ref[...]
    s, c = _sincos_f32(ang)
    # arithmetic blend (mask in {0,1}) -- same broadcast pattern as the freq mul
    emb_ref[...] = s + cosmask_ref[...] * (c - s)


# ------------------------- wrapper / param setup -------------------------

class GridCellSpatialRelationEncoderPallas:
    def __init__(self, spa_embed_dim, coord_dim=2, frequency_num=16,
                 max_radius=0.01, min_radius=1e-05, freq_init='geometric',
                 use_ffn=True, row_block=16384, key=jax.random.PRNGKey(0)):
        assert freq_init == 'geometric'
        self.spa_embed_dim = spa_embed_dim
        self.coord_dim = coord_dim
        self.frequency_num = frequency_num
        self.max_radius = max_radius
        self.min_radius = min_radius
        self.use_ffn = use_ffn
        self.row_block = row_block            # original rows per grid step (sweepable)

        F = frequency_num
        C = coord_dim
        D = spa_embed_dim
        E0 = C * F * 2                        # input_embed_dim (= 64 for C=2, F=16)
        G0 = C * F                            # grouped (angle) slots per point
        self.input_embed_dim = E0

        # Rows packed per kernel row: keep P*D a multiple of 128 (lane-dense FFN
        # stores) and P*E0 >= 128 for the raw path; cap to bound weight size.
        self.P = P = min(max(128 // math.gcd(D, 128), 2), 8)

        # geometric frequency list (same as _cal_freq_list; computed in f64)
        log_inc = math.log(float(max_radius) / float(min_radius)) / (F - 1.0)
        freq64 = 1.0 / (min_radius * np.exp(np.arange(F, dtype=np.float64) * log_inc))
        self.freq_list = jnp.asarray(freq64, jnp.float32)               # (F,)

        # --- grouped layout (FFN kernel): slot g -> (k, c, f) ---
        g = np.arange(P * G0)
        k_g = g // G0
        c_g = (g % G0) // F
        f_g = g % F
        self.freq_g = jnp.asarray(freq64[f_g], jnp.float32).reshape(1, P * G0)
        row_of_g = k_g * C + c_g
        self.sel_g = jnp.asarray(
            (np.arange(P * C)[:, None] == row_of_g[None, :]).astype(np.float32))

        # --- interleaved layout (raw kernel): slot j -> (k, c, f, parity) ---
        j = np.arange(P * E0)
        k_j = j // E0
        s_j = j % E0
        c_j = s_j // (2 * F)
        f_j = (s_j % (2 * F)) // 2
        p_j = s_j % 2
        self.freq_i = jnp.asarray(freq64[f_j], jnp.float32).reshape(1, P * E0)
        self.cosmask_i = jnp.asarray((p_j == 1).astype(np.float32)).reshape(1, P * E0)
        row_of_j = k_j * C + c_j
        self.sel_i = jnp.asarray(
            (np.arange(P * C)[:, None] == row_of_j[None, :]).astype(np.float32))

        # FFN params: MultiLayerFeedForwardNN(num_hidden_layers=0) ==
        #   ReLU(Linear(E0 -> D)); xavier_uniform weight, torch-default bias.
        # TODO(synk): nn.Dropout(p=0.5) omitted (inference semantics).
        k_w, k_b = jax.random.split(key)
        bound_w = math.sqrt(6.0 / (E0 + D))
        w = jax.random.uniform(k_w, (D, E0), jnp.float32,
                               minval=-bound_w, maxval=bound_w)          # torch (out, in)
        bound_b = 1.0 / math.sqrt(E0)
        b = jax.random.uniform(k_b, (D,), jnp.float32,
                               minval=-bound_b, maxval=bound_b)
        self.w_t = w.T                                                   # (E0, D)
        self.b = b                                                       # (D,)

        # Block-diagonal weights with the grouped-column permutation absorbed:
        # grouped slot (k, c, f) sin term -> W^T row (c*2F + 2f), cos -> +1 row,
        # placed in output block k.
        wt = np.asarray(self.w_t)
        ws = np.zeros((P * G0, P * D), np.float32)
        wc = np.zeros((P * G0, P * D), np.float32)
        rows = np.arange(G0)
        cc = rows // F
        ff = rows % F
        for kk in range(P):
            ws[kk * G0:(kk + 1) * G0, kk * D:(kk + 1) * D] = wt[cc * 2 * F + 2 * ff + 0, :]
            wc[kk * G0:(kk + 1) * G0, kk * D:(kk + 1) * D] = wt[cc * 2 * F + 2 * ff + 1, :]
        self.w_sin = jnp.asarray(ws)                                     # (P*G0, P*D)
        self.w_cos = jnp.asarray(wc)                                     # (P*G0, P*D)
        self.b_pack = jnp.tile(b.reshape(1, D), (1, P))                  # (1, P*D)

    def __call__(self, coords):
        """coords: (batch, num_context_pt, coord_dim) float32.
        Returns sprenc (B, N, spa_embed_dim) if use_ffn else spr_embeds (B, N, E0)."""
        coords = jnp.asarray(coords, jnp.float32)
        B, N, C = coords.shape
        assert C == self.coord_dim
        P = self.P
        D = self.spa_embed_dim
        E0 = self.input_embed_dim
        G0 = C * self.frequency_num
        M = B * N

        # Pack P rows per kernel row; pad only to a multiple of 8 packed rows
        # (<= 8*P-1 wasted rows).  Ragged last grid block is masked by Pallas.
        Mp = -(-M // P)
        Mp8 = _round_up(max(Mp, 1), 8)
        M_pad = Mp8 * P

        TMp = _round_up(max(self.row_block // P, 8), 8)
        if Mp8 > 8:
            # guarantee >= 2 grid steps so v7x can shard the parallel axis over 2 TCs
            TMp = min(TMp, _round_up(-(-Mp8 // 2), 8))
        TMp = min(TMp, Mp8)
        grid = (-(-Mp8 // TMp),)

        coords_flat = coords.reshape(M, C)
        if M_pad != M:
            coords_flat = jnp.concatenate(
                [coords_flat, jnp.zeros((M_pad - M, C), jnp.float32)], axis=0)
        coords_packed = coords_flat.reshape(Mp8, P * C)

        coords_spec = pl.BlockSpec((TMp, P * C), lambda i: (i, 0))
        cparams = pltpu.CompilerParams(
            dimension_semantics=("parallel",),
            vmem_limit_bytes=32 * 1024 * 1024)

        if self.use_ffn:
            out_p = pl.pallas_call(
                _ffn_kernel,
                out_shape=jax.ShapeDtypeStruct((Mp8, P * D), jnp.float32),
                grid_spec=pltpu.PrefetchScalarGridSpec(
                    num_scalar_prefetch=0,
                    grid=grid,
                    in_specs=[coords_spec,
                              pl.BlockSpec((P * C, P * G0), lambda i: (0, 0)),
                              pl.BlockSpec((1, P * G0), lambda i: (0, 0)),
                              pl.BlockSpec((P * G0, P * D), lambda i: (0, 0)),
                              pl.BlockSpec((P * G0, P * D), lambda i: (0, 0)),
                              pl.BlockSpec((1, P * D), lambda i: (0, 0))],
                    out_specs=pl.BlockSpec((TMp, P * D), lambda i: (i, 0)),
                ),
                compiler_params=cparams,
            )(coords_packed, self.sel_g, self.freq_g, self.w_sin, self.w_cos,
              self.b_pack)
            out = out_p.reshape(M_pad, D)
            if M_pad != M:
                out = out[:M]
            return out.reshape(B, N, D)

        emb_p = pl.pallas_call(
            _emb_kernel,
            out_shape=jax.ShapeDtypeStruct((Mp8, P * E0), jnp.float32),
            grid_spec=pltpu.PrefetchScalarGridSpec(
                num_scalar_prefetch=0,
                grid=grid,
                in_specs=[coords_spec,
                          pl.BlockSpec((P * C, P * E0), lambda i: (0, 0)),
                          pl.BlockSpec((1, P * E0), lambda i: (0, 0)),
                          pl.BlockSpec((1, P * E0), lambda i: (0, 0))],
                out_specs=pl.BlockSpec((TMp, P * E0), lambda i: (i, 0)),
            ),
            compiler_params=cparams,
        )(coords_packed, self.sel_i, self.freq_i, self.cosmask_i)
        emb = emb_p.reshape(M_pad, E0)
        if M_pad != M:
            emb = emb[:M]
        return emb.reshape(B, N, E0)

    # ---- references for verification ----

    def reference(self, coords):
        """Pure-JAX f32 reference using the SAME _sincos_f32 as the kernels
        (tight check of the Pallas tiling/packing/permutation/FFN plumbing)."""
        coords = jnp.asarray(coords, jnp.float32)
        B, N, C = coords.shape
        F = self.frequency_num
        ang = coords[..., None] * self.freq_list[None, None, None, :]    # (B,N,C,F)
        s, c = _sincos_f32(ang)
        emb = jnp.stack([s, c], axis=-1).reshape(B, N, C * F * 2)
        if not self.use_ffn:
            return emb
        h = emb @ self.w_t + self.b
        return jnp.maximum(h, 0.0)

    def reference_f64(self, coords):
        """NumPy float64 true sin/cos reference matching the PyTorch
        make_input_embeds semantics (looser, true-semantics check).  The f32
        kernel has an unavoidable ~|angle|*2^-24 error floor vs this."""
        coords = np.asarray(coords, np.float64)
        B, N, C = coords.shape
        F = self.frequency_num
        log_inc = math.log(float(self.max_radius) / float(self.min_radius)) / (F - 1.0)
        freq = 1.0 / (self.min_radius * np.exp(np.arange(F, dtype=np.float64) * log_inc))
        ang = coords[..., None] * freq                                   # (B,N,C,F)
        emb = np.stack([np.sin(ang), np.cos(ang)], axis=-1).reshape(B, N, C * F * 2)
        if not self.use_ffn:
            return emb
        h = emb @ np.asarray(self.w_t, np.float64) + np.asarray(self.b, np.float64)
        return np.maximum(h, 0.0)


# ------------------------- main -------------------------

if __name__ == "__main__":
    key = jax.random.PRNGKey(0)
    k_coords, k_params, k_coords2, k_coords3 = jax.random.split(key, 4)

    batch, num_pts, coord_dim = 2, 8, 2
    spa_embed_dim = 32

    coords = jax.random.uniform(k_coords, (batch, num_pts, coord_dim),
                                jnp.float32, minval=-0.01, maxval=0.01)

    enc = GridCellSpatialRelationEncoderPallas(
        spa_embed_dim=spa_embed_dim, coord_dim=coord_dim, frequency_num=16,
        max_radius=0.01, min_radius=1e-05, freq_init='geometric',
        use_ffn=True, key=k_params)

    out = jax.block_until_ready(enc(coords))
    assert out.shape == (batch, num_pts, spa_embed_dim)
    ref = enc.reference(coords)
    assert jnp.allclose(out, ref, atol=1e-4, rtol=1e-4), \
        float(jnp.max(jnp.abs(out - ref)))
    ref64 = enc.reference_f64(np.asarray(coords))
    assert np.allclose(np.asarray(out, np.float64), ref64, atol=5e-3, rtol=5e-3), \
        float(np.max(np.abs(np.asarray(out, np.float64) - ref64)))

    # Raw-embedding path (ffn=None): tight same-formulation check + float64
    # true sin/cos semantic check (f32 angles reach ~1e3 -> ~1e-4 error floor).
    enc_raw = GridCellSpatialRelationEncoderPallas(
        spa_embed_dim=spa_embed_dim, use_ffn=False, key=k_params)
    emb = jax.block_until_ready(enc_raw(coords))
    assert emb.shape == (batch, num_pts, 2 * 16 * 2)
    emb_ref = enc_raw.reference(coords)
    assert jnp.allclose(emb, emb_ref, atol=1e-4, rtol=1e-4), \
        float(jnp.max(jnp.abs(emb - emb_ref)))
    emb64 = enc_raw.reference_f64(np.asarray(coords))
    assert np.allclose(np.asarray(emb, np.float64), emb64, atol=2e-3, rtol=2e-3), \
        float(np.max(np.abs(np.asarray(emb, np.float64) - emb64)))

    # Non-divisible row count (pad-to-P + tail trim, 2 grid steps).
    coords2 = jax.random.uniform(k_coords2, (3, 37, coord_dim),
                                 jnp.float32, minval=-0.01, maxval=0.01)
    out2 = jax.block_until_ready(enc(coords2))
    assert out2.shape == (3, 37, spa_embed_dim)
    ref2 = enc.reference(coords2)
    assert jnp.allclose(out2, ref2, atol=1e-4, rtol=1e-4), \
        float(jnp.max(jnp.abs(out2 - ref2)))

    # Shape whose packed row count does not divide the tile -> ragged last block.
    coords3 = jax.random.uniform(k_coords3, (5, 41, coord_dim),
                                 jnp.float32, minval=-0.01, maxval=0.01)
    out3 = jax.block_until_ready(enc(coords3))
    assert out3.shape == (5, 41, spa_embed_dim)
    ref3 = enc.reference(coords3)
    assert jnp.allclose(out3, ref3, atol=1e-4, rtol=1e-4), \
        float(jnp.max(jnp.abs(out3 - ref3)))

    print("KERNEL_OK")
</pallas_src>

<mosaic_0001>
module attributes {stable_mosaic.version = 11 : i64} {
  func.func @_ffn_kernel(%arg0: i32, %arg1: memref<8x8xf32, #tpu.memory_space<vmem>>, %arg2: memref<8x128xf32, #tpu.memory_space<vmem>>, %arg3: memref<1x128xf32, #tpu.memory_space<vmem>>, %arg4: memref<128x128xf32, #tpu.memory_space<vmem>>, %arg5: memref<128x128xf32, #tpu.memory_space<vmem>>, %arg6: memref<1x128xf32, #tpu.memory_space<vmem>>, %arg7: memref<8x128xf32, #tpu.memory_space<vmem>>) attributes {dimension_semantics = [#tpu.dimension_semantics<parallel>], iteration_bounds = array<i64: 1>, scalar_prefetch = 0 : i64, scratch_operands = 0 : i64, tpu.core_type = #tpu.core_type<tc>, window_params = [{transform_indices = @transform_0, window_bounds = array<i64: 8, 8>}, {pipeline_mode = #tpu.pipeline_mode<synchronous>, transform_indices = @transform_1, window_bounds = array<i64: 8, 128>}, {pipeline_mode = #tpu.pipeline_mode<synchronous>, transform_indices = @transform_2, window_bounds = array<i64: 1, 128>}, {pipeline_mode = #tpu.pipeline_mode<synchronous>, transform_indices = @transform_3, window_bounds = array<i64: 128, 128>}, {pipeline_mode = #tpu.pipeline_mode<synchronous>, transform_indices = @transform_4, window_bounds = array<i64: 128, 128>}, {pipeline_mode = #tpu.pipeline_mode<synchronous>, transform_indices = @transform_5, window_bounds = array<i64: 1, 128>}, {transform_indices = @transform_6, window_bounds = array<i64: 8, 128>}]} {
    %c0 = arith.constant 0 : index
    %c0_0 = arith.constant 0 : index
    %0 = vector.load %arg1[%c0, %c0_0] : memref<8x8xf32, #tpu.memory_space<vmem>>, vector<8x8xf32>
    %c0_1 = arith.constant 0 : index
    %c0_2 = arith.constant 0 : index
    %1 = vector.load %arg2[%c0_1, %c0_2] : memref<8x128xf32, #tpu.memory_space<vmem>>, vector<8x128xf32>
    %cst = arith.constant dense<0.000000e+00> : vector<8x128xf32>
    %2 = tpu.matmul %0, %1, %cst {dimension_numbers = #tpu.dot_dimension_numbers<[1], [0], [0], [1], [0, 0, 1, 1], [], []>} : vector<8x8xf32>, vector<8x128xf32>, vector<8x128xf32> -> vector<8x128xf32>
    %c0_3 = arith.constant 0 : index
    %c0_4 = arith.constant 0 : index
    %3 = vector.load %arg3[%c0_3, %c0_4] : memref<1x128xf32, #tpu.memory_space<vmem>>, vector<1x128xf32>
    %4 = vector.broadcast %3 : vector<1x128xf32> to vector<8x128xf32>
    %5 = arith.mulf %2, %4 : vector<8x128xf32>
    %cst_5 = arith.constant 0.636619746 : f32
    %6 = vector.broadcast %cst_5 : f32 to vector<8x128xf32>
    %7 = arith.mulf %5, %6 : vector<8x128xf32>
    %cst_6 = arith.constant 5.000000e-01 : f32
    %8 = vector.broadcast %cst_6 : f32 to vector<8x128xf32>
    %9 = arith.addf %7, %8 : vector<8x128xf32>
    %10 = math.floor %9 : vector<8x128xf32>
    %cst_7 = arith.constant 1.5703125 : f32
    %11 = vector.broadcast %cst_7 : f32 to vector<8x128xf32>
    %12 = arith.mulf %10, %11 : vector<8x128xf32>
    %13 = arith.subf %5, %12 : vector<8x128xf32>
    %cst_8 = arith.constant 4.83751297E-4 : f32
    %14 = vector.broadcast %cst_8 : f32 to vector<8x128xf32>
    %15 = arith.mulf %10, %14 : vector<8x128xf32>
    %16 = arith.subf %13, %15 : vector<8x128xf32>
    %cst_9 = arith.constant 7.549790e-08 : f32
    %17 = vector.broadcast %cst_9 : f32 to vector<8x128xf32>
    %18 = arith.mulf %10, %17 : vector<8x128xf32>
    %19 = arith.subf %16, %18 : vector<8x128xf32>
    %20 = arith.fptosi %10 : vector<8x128xf32> to vector<8x128xi32>
    %21 = arith.mulf %19, %19 : vector<8x128xf32>
    %22 = arith.mulf %19, %21 : vector<8x128xf32>
    %cst_10 = arith.constant -1.95152956E-4 : f32
    %23 = vector.broadcast %cst_10 : f32 to vector<8x128xf32>
    %24 = arith.mulf %21, %23 : vector<8x128xf32>
    %cst_11 = arith.constant 0.00833216123 : f32
    %25 = vector.broadcast %cst_11 : f32 to vector<8x128xf32>
    %26 = arith.addf %25, %24 : vector<8x128xf32>
    %27 = arith.mulf %21, %26 : vector<8x128xf32>
    %cst_12 = arith.constant -0.166666552 : f32
    %28 = vector.broadcast %cst_12 : f32 to vector<8x128xf32>
    %29 = arith.addf %28, %27 : vector<8x128xf32>
    %30 = arith.mulf %22, %29 : vector<8x128xf32>
    %31 = arith.addf %19, %30 : vector<8x128xf32>
    %cst_13 = arith.constant 2.44331568E-5 : f32
    %32 = vector.broadcast %cst_13 : f32 to vector<8x128xf32>
    %33 = arith.mulf %21, %32 : vector<8x128xf32>
    %cst_14 = arith.constant -0.00138873165 : f32
    %34 = vector.broadcast %cst_14 : f32 to vector<8x128xf32>
    %35 = arith.addf %34, %33 : vector<8x128xf32>
    %36 = arith.mulf %21, %35 : vector<8x128xf32>
    %cst_15 = arith.constant 0.0416666456 : f32
    %37 = vector.broadcast %cst_15 : f32 to vector<8x128xf32>
    %38 = arith.addf %37, %36 : vector<8x128xf32>
    %39 = arith.mulf %21, %38 : vector<8x128xf32>
    %cst_16 = arith.constant -5.000000e-01 : f32
    %40 = vector.broadcast %cst_16 : f32 to vector<8x128xf32>
    %41 = arith.addf %40, %39 : vector<8x128xf32>
    %42 = arith.mulf %21, %41 : vector<8x128xf32>
    %cst_17 = arith.constant 1.000000e+00 : f32
    %43 = vector.broadcast %cst_17 : f32 to vector<8x128xf32>
    %44 = arith.addf %43, %42 : vector<8x128xf32>
    %c1_i32 = arith.constant 1 : i32
    %45 = vector.broadcast %c1_i32 : i32 to vector<8x128xi32>
    %46 = arith.andi %20, %45 : vector<8x128xi32>
    %c1_i32_18 = arith.constant 1 : i32
    %47 = vector.broadcast %c1_i32_18 : i32 to vector<8x128xi32>
    %48 = arith.cmpi eq, %46, %47 : vector<8x128xi32>
    %49 = arith.select %48, %44, %31 : vector<8x128xi1>, vector<8x128xf32>
    %50 = arith.select %48, %31, %44 : vector<8x128xi1>, vector<8x128xf32>
    %c2_i32 = arith.constant 2 : i32
    %51 = vector.broadcast %c2_i32 : i32 to vector<8x128xi32>
    %52 = arith.andi %20, %51 : vector<8x128xi32>
    %c2_i32_19 = arith.constant 2 : i32
    %53 = vector.broadcast %c2_i32_19 : i32 to vector<8x128xi32>
    %54 = arith.cmpi eq, %52, %53 : vector<8x128xi32>
    %cst_20 = arith.constant 0.000000e+00 : f32
    %55 = vector.broadcast %cst_20 : f32 to vector<8x128xf32>
    %56 = arith.subf %55, %49 : vector<8x128xf32>
    %57 = arith.select %54, %56, %49 : vector<8x128xi1>, vector<8x128xf32>
    %c1_i32_21 = arith.constant 1 : i32
    %58 = vector.broadcast %c1_i32_21 : i32 to vector<8x128xi32>
    %59 = arith.addi %20, %58 : vector<8x128xi32>
    %c2_i32_22 = arith.constant 2 : i32
    %60 = vector.broadcast %c2_i32_22 : i32 to vector<8x128xi32>
    %61 = arith.andi %59, %60 : vector<8x128xi32>
    %c2_i32_23 = arith.constant 2 : i32
    %62 = vector.broadcast %c2_i32_23 : i32 to vector<8x128xi32>
    %63 = arith.cmpi eq, %61, %62 : vector<8x128xi32>
    %cst_24 = arith.constant 0.000000e+00 : f32
    %64 = vector.broadcast %cst_24 : f32 to vector<8x128xf32>
    %65 = arith.subf %64, %50 : vector<8x128xf32>
    %66 = arith.select %63, %65, %50 : vector<8x128xi1>, vector<8x128xf32>
    %c0_25 = arith.constant 0 : index
    %c0_26 = arith.constant 0 : index
    %67 = vector.load %arg4[%c0_25, %c0_26] : memref<128x128xf32, #tpu.memory_space<vmem>>, vector<128x128xf32>
    %cst_27 = arith.constant dense<0.000000e+00> : vector<8x128xf32>
    %68 = tpu.matmul %57, %67, %cst_27 {dimension_numbers = #tpu.dot_dimension_numbers<[1], [0], [0], [1], [0, 0, 1, 1], [], []>} : vector<8x128xf32>, vector<128x128xf32>, vector<8x128xf32> -> vector<8x128xf32>
    %c0_28 = arith.constant 0 : index
    %c0_29 = arith.constant 0 : index
    %69 = vector.load %arg5[%c0_28, %c0_29] : memref<128x128xf32, #tpu.memory_space<vmem>>, vector<128x128xf32>
    %cst_30 = arith.constant dense<0.000000e+00> : vector<8x128xf32>
    %70 = tpu.matmul %66, %69, %cst_30 {dimension_numbers = #tpu.dot_dimension_numbers<[1], [0], [0], [1], [0, 0, 1, 1], [], []>} : vector<8x128xf32>, vector<128x128xf32>, vector<8x128xf32> -> vector<8x128xf32>
    %71 = arith.addf %68, %70 : vector<8x128xf32>
    %c0_31 = arith.constant 0 : index
    %c0_32 = arith.constant 0 : index
    %72 = vector.load %arg6[%c0_31, %c0_32] : memref<1x128xf32, #tpu.memory_space<vmem>>, vector<1x128xf32>
    %73 = vector.broadcast %72 : vector<1x128xf32> to vector<8x128xf32>
    %74 = arith.addf %71, %73 : vector<8x128xf32>
    %cst_33 = arith.constant 0.000000e+00 : f32
    %75 = vector.broadcast %cst_33 : f32 to vector<8x128xf32>
    %76 = arith.maximumf %74, %75 : vector<8x128xf32>
    %c0_34 = arith.constant 0 : index
    %c0_35 = arith.constant 0 : index
    %77 = vector.load %arg7[%c0_34, %c0_35] : memref<8x128xf32, #tpu.memory_space<vmem>>, vector<8x128xf32>
    tpu.vector_store %arg7[%c0_34, %c0_35], %76 {strides = array<i32>} : memref<8x128xf32, #tpu.memory_space<vmem>>, vector<8x128xf32>,
    return
  }
  func.func @transform_0(%arg0: i32) -> (i32, i32) {
    %c0_i32 = arith.constant 0 : i32
    %c0_i32_0 = arith.constant 0 : i32
    return %arg0, %c0_i32 : i32, i32
  }
  func.func @transform_1(%arg0: i32) -> (i32, i32) {
    %c0_i32 = arith.constant 0 : i32
    %c0_i32_0 = arith.constant 0 : i32
    %c0_i32_1 = arith.constant 0 : i32
    return %c0_i32, %c0_i32_0 : i32, i32
  }
  func.func @transform_2(%arg0: i32) -> (i32, i32) {
    %c0_i32 = arith.constant 0 : i32
    %c0_i32_0 = arith.constant 0 : i32
    %c0_i32_1 = arith.constant 0 : i32
    return %c0_i32, %c0_i32_0 : i32, i32
  }
  func.func @transform_3(%arg0: i32) -> (i32, i32) {
    %c0_i32 = arith.constant 0 : i32
    %c0_i32_0 = arith.constant 0 : i32
    %c0_i32_1 = arith.constant 0 : i32
    return %c0_i32, %c0_i32_0 : i32, i32
  }
  func.func @transform_4(%arg0: i32) -> (i32, i32) {
    %c0_i32 = arith.constant 0 : i32
    %c0_i32_0 = arith.constant 0 : i32
    %c0_i32_1 = arith.constant 0 : i32
    return %c0_i32, %c0_i32_0 : i32, i32
  }
  func.func @transform_5(%arg0: i32) -> (i32, i32) {
    %c0_i32 = arith.constant 0 : i32
    %c0_i32_0 = arith.constant 0 : i32
    %c0_i32_1 = arith.constant 0 : i32
    return %c0_i32, %c0_i32_0 : i32, i32
  }
  func.func @transform_6(%arg0: i32) -> (i32, i32) {
    %c0_i32 = arith.constant 0 : i32
    %c0_i32_0 = arith.constant 0 : i32
    return %arg0, %c0_i32 : i32, i32
  }
}

</mosaic_0001>

<llo_original>
// kernel: tpu_custom_call.1
$region0: #{tpu_custom_call.1}
  #allocation0 [shape = 'u32[]', space=smem, size = 0x4, offset = 0x4, fixed_abs, tag = 'smem constant byte address 0x4 - core index']
  #allocation1 [shape = 'u32[144,128]{1,0:T(1,128)}', space=vmem, size = 0x12000, scoped, tag = 'internal scratch']
  %s0 = inlined_call_operand.hbm [shape: f32[8,8], index: 0, kind: input, shape index: {}]
  %s1 = inlined_call_operand.hbm [shape: f32[8,128], index: 1, kind: input, shape index: {}]
  %s2 = inlined_call_operand.vmem [shape: f32[1,128], index: 2, kind: input, shape index: {}]
  %s3 = inlined_call_operand.hbm [shape: f32[128,128], index: 3, kind: input, shape index: {}]
  %s4 = inlined_call_operand.hbm [shape: f32[128,128], index: 4, kind: input, shape index: {}]
  %s5 = inlined_call_operand.vmem [shape: f32[1,128], index: 5, kind: input, shape index: {}]
  %s6 = inlined_call_operand.hbm [shape: f32[8,128], index: 6, kind: output, shape index: {}]
  %s7 = sld [smem:[#allocation0]]
  $region50: #{tpu_custom_call.1} parent=0
    _
  %s9 = ssub.s32 1, %s7
  %s10 = scalar_select 0, %s9, %s7
  $region1: #{tpu_custom_call.1} parent=0
    #allocation2 [shape = 'u8[4096]{0}', space=vmem, size = 0x1000, scoped, tag = 'input window, operand 0, single buffered']
    #allocation3 [shape = 's32[1]{0}', space=sflag, size = 0x4, scoped, tag = 'scoped memory for tpu_custom_call.1']
    #allocation4 [shape = 's32[1]{0}', space=sflag, size = 0x4, scoped, tag = 'scoped memory for tpu_custom_call.1']
    #allocation5 [shape = 'u8[4096]{0}', space=vmem, size = 0x1000, scoped, tag = 'input window, operand 1, single buffered']
    #allocation6 [shape = 's32[1]{0}', space=sflag, size = 0x4, scoped, tag = 'scoped memory for tpu_custom_call.1']
    #allocation7 [shape = 'u8[65536]{0}', space=vmem, size = 0x10000, scoped, tag = 'input window, operand 3, single buffered']
    #allocation8 [shape = 'u8[65536]{0}', space=vmem, size = 0x10000, scoped, tag = 'input window, operand 4, single buffered']
    #allocation9 [shape = 's32[1]{0}', space=sflag, size = 0x4, scoped, tag = 'scoped memory for tpu_custom_call.1']
    #allocation10 [shape = 'u8[4096]{0}', space=vmem, size = 0x1000, scoped, tag = 'output window, operand 0, single buffered']
    %11 = vsyncpa [#allocation3], 0
    %12 = vsyncpa [#allocation6], 0
    %13 = vsyncpa [#allocation9], 0
    %14 = vsyncpa [#allocation4], 0
    // Predicated region
    $region2: #{tpu_custom_call.1} parent=1 // pred_check
      _
    $region3: #{tpu_custom_call.1} parent=1 // pred_check_branch
      %16 = sbr.rel (0) target = $region5
    $region4: #{tpu_custom_call.1} parent=1 // pred_region
      %s18 = ssub.s32 128, 128
      %19 = vsyncadd [#allocation3], %s18
      %s21 = sshll.u32 [#allocation2], 4
      %s22 = int_to_ptr.vmem [resolvable:$true] %s21
      %24 = dma.hbm_to_vmem [thread:$0]  %s0, 128, %s22, [#allocation3]
    $region5: #{tpu_custom_call.1} parent=1 // pred_fallthru
      _
    // Predicated region
    $region6: #{tpu_custom_call.1} parent=1 // pred_check
      _
    $region7: #{tpu_custom_call.1} parent=1 // pred_check_branch
      %26 = sbr.rel (0) target = $region9
    $region8: #{tpu_custom_call.1} parent=1 // pred_region
      %s28 = ssub.s32 128, 128
      %29 = vsyncadd [#allocation6], %s28
      %s31 = sshll.u32 [#allocation5], 4
      %s32 = int_to_ptr.vmem [resolvable:$true] %s31
      %34 = dma.hbm_to_vmem [thread:$0]  %s1, 128, %s32, [#allocation6]
    $region9: #{tpu_custom_call.1} parent=1 // pred_fallthru
      _
    // Predicated region
    $region10: #{tpu_custom_call.1} parent=1 // pred_check
      _
    $region11: #{tpu_custom_call.1} parent=1 // pred_check_branch
      %36 = sbr.rel (0) target = $region13
    $region12: #{tpu_custom_call.1} parent=1 // pred_region
      _
    $region13: #{tpu_custom_call.1} parent=1 // pred_fallthru
      _
    // Predicated region
    $region14: #{tpu_custom_call.1} parent=1 // pred_check
      _
    $region15: #{tpu_custom_call.1} parent=1 // pred_check_branch
      %38 = sbr.rel (0) target = $region17
    $region16: #{tpu_custom_call.1} parent=1 // pred_region
      %s40 = ssub.s32 2048, 2048
      %41 = vsyncadd [#allocation6], %s40
      %s42 = sshll.u32 [#allocation7], 4
      %s43 = int_to_ptr.vmem [resolvable:$true] %s42
      %48 = dma.hbm_to_vmem [thread:$0]  %s3, 2048, %s43, [#allocation6], 128, 128, 8
    $region17: #{tpu_custom_call.1} parent=1 // pred_fallthru
      _
    // Predicated region
    $region18: #{tpu_custom_call.1} parent=1 // pred_check
      _
    $region19: #{tpu_custom_call.1} parent=1 // pred_check_branch
      %50 = sbr.rel (0) target = $region21
    $region20: #{tpu_custom_call.1} parent=1 // pred_region
      %s52 = ssub.s32 2048, 2048
      %53 = vsyncadd [#allocation9], %s52
      %s54 = sshll.u32 [#allocation8], 4
      %s55 = int_to_ptr.vmem [resolvable:$true] %s54
      %60 = dma.hbm_to_vmem [thread:$0]  %s4, 2048, %s55, [#allocation9], 128, 128, 8
    $region21: #{tpu_custom_call.1} parent=1 // pred_fallthru
      _
    // Predicated region
    $region22: #{tpu_custom_call.1} parent=1 // pred_check
      _
    $region23: #{tpu_custom_call.1} parent=1 // pred_check_branch
      %62 = sbr.rel (0) target = $region25
    $region24: #{tpu_custom_call.1} parent=1 // pred_region
      _
    $region25: #{tpu_custom_call.1} parent=1 // pred_fallthru
      _
    // Predicated region
    $region26: #{tpu_custom_call.1} parent=1 // pred_check
      _
    $region27: #{tpu_custom_call.1} parent=1 // pred_check_branch
      %64 = sbr.rel (0) target = $region29
    $region28: #{tpu_custom_call.1} parent=1 // pred_region
      %65 = dma.done [#allocation3], 128
    $region29: #{tpu_custom_call.1} parent=1 // pred_fallthru
      _
    // Predicated region
    $region30: #{tpu_custom_call.1} parent=1 // pred_check
      _
    $region31: #{tpu_custom_call.1} parent=1 // pred_check_branch
      %67 = sbr.rel (0) target = $region33
    $region32: #{tpu_custom_call.1} parent=1 // pred_region
      %68 = dma.done [#allocation6], 128
    $region33: #{tpu_custom_call.1} parent=1 // pred_fallthru
      _
    // Predicated region
    $region34: #{tpu_custom_call.1} parent=1 // pred_check
      _
    $region35: #{tpu_custom_call.1} parent=1 // pred_check_branch
      %70 = sbr.rel (0) target = $region37
    $region36: #{tpu_custom_call.1} parent=1 // pred_region
      %71 = dma.done [#allocation6], 2048
    $region37: #{tpu_custom_call.1} parent=1 // pred_fallthru
      _
    // Predicated region
    $region38: #{tpu_custom_call.1} parent=1 // pred_check
      _
    $region39: #{tpu_custom_call.1} parent=1 // pred_check_branch
      %73 = sbr.rel (0) target = $region41
    $region40: #{tpu_custom_call.1} parent=1 // pred_region
      %74 = dma.done [#allocation9], 2048
    $region41: #{tpu_custom_call.1} parent=1 // pred_fallthru
      _
    %v75 = vld [vmem:[#allocation2] sm:$0xff]
    %v76 = vld [vmem:[#allocation5] sm:$0xff]
    %vm77 = vcmask 64512
    %v79 = vsel %vm77, %v75, 0
    %81 = vmatprep.subr.mxu0 0.0
    %82 = vmatpush1.msra.mxu0 0.0
    %83 = vmatprep.subr.mxu0 0.0
    %84 = vmatpush1.msra.mxu0 0.0
    %85 = vmatprep.subr.mxu0 0.0
    %86 = vmatpush1.msra.mxu0 0.0
    %87 = vmatprep.subr.mxu0 0.0
    %88 = vmatpush1.msra.mxu0 0.0
    %89 = vmatprep.subr.mxu0 0.0
    %90 = vmatpush1.msra.mxu0 0.0
    %91 = vmatprep.subr.mxu0 0.0
    %92 = vmatpush1.msra.mxu0 0.0
    %93 = vmatprep.subr.mxu0 0.0
    %94 = vmatpush1.msra.mxu0 0.0
    %95 = vmatprep.subr.mxu0 0.0
    %96 = vmatpush1.msra.mxu0 0.0
    %97 = vmatprep.subr.mxu0 0.0
    %98 = vmatpush1.msra.mxu0 0.0
    %99 = vmatprep.subr.mxu0 0.0
    %100 = vmatpush1.msra.mxu0 0.0
    %101 = vmatprep.subr.mxu0 0.0
    %102 = vmatpush1.msra.mxu0 0.0
    %103 = vmatprep.subr.mxu0 0.0
    %104 = vmatpush1.msra.mxu0 0.0
    %105 = vmatprep.subr.mxu0 0.0
    %106 = vmatpush1.msra.mxu0 0.0
    %107 = vmatprep.subr.mxu0 0.0
    %108 = vmatpush1.msra.mxu0 0.0
    %109 = vmatprep.subr.mxu0 0.0
    %110 = vmatpush1.msra.mxu0 0.0
    %111 = vmatprep.subr.mxu0 0.0
    %112 = vmatpush1.msra.mxu0 %v76
    %113 = vmatprep.subr.mxu0 0.0
    %114 = vmatpush2.msra.mxu0 0.0
    %115 = vmatprep.subr.mxu0 0.0
    %116 = vmatpush2.msra.mxu0 0.0
    %117 = vmatprep.subr.mxu0 0.0
    %118 = vmatpush2.msra.mxu0 0.0
    %119 = vmatprep.subr.mxu0 0.0
    %120 = vmatpush2.msra.mxu0 0.0
    %121 = vmatprep.subr.mxu0 0.0
    %122 = vmatpush2.msra.mxu0 0.0
    %123 = vmatprep.subr.mxu0 0.0
    %124 = vmatpush2.msra.mxu0 0.0
    %125 = vmatprep.subr.mxu0 0.0
    %126 = vmatpush2.msra.mxu0 0.0
    %127 = vmatprep.subr.mxu0 0.0
    %128 = vmatpush2.msra.mxu0 0.0
    %129 = vmatprep.subr.mxu0 0.0
    %130 = vmatpush2.msra.mxu0 0.0
    %131 = vmatprep.subr.mxu0 0.0
    %132 = vmatpush2.msra.mxu0 0.0
    %133 = vmatprep.subr.mxu0 0.0
    %134 = vmatpush2.msra.mxu0 0.0
    %135 = vmatprep.subr.mxu0 0.0
    %136 = vmatpush2.msra.mxu0 0.0
    %137 = vmatprep.subr.mxu0 0.0
    %138 = vmatpush2.msra.mxu0 0.0
    %139 = vmatprep.subr.mxu0 0.0
    %140 = vmatpush2.msra.mxu0 0.0
    %141 = vmatprep.subr.mxu0 0.0
    %142 = vmatpush2.msra.mxu0 0.0
    %143 = vmatprep.subr.mxu0 0.0
    %144 = vmatpush2.msra.mxu0 0.0
    %145 = vmatprep.mubr.f32.mxu0 0.0
    %146 = vmatmul.mubr.f32.gmra.mxu0 %v79
    %v147 = vpop.f32.mrf.mxu0
    %v148 = vadd.f32 0.0, %v147
    %v149 = vpop.f32.mrf.mxu0
    %150 = vdwg.mxu0
    %v151 = vld [vmem:[%s2] sm:$0x1]
    %v153 = vlaneseq
    %v154 = vshrl.u32 %v153, 7
    %v155 = vsub.s32 0, %v154
    %v156 = vrot.slane %v151, %v155
    %v158 = vmul.f32 %v148, %v156
    %v159 = vmul.f32 %v158, 0.63661975
    %v160 = vadd.f32 %v159, 0.5
    %v161 = vfloor.f32 %v160
    %v162 = vmul.f32 %v161, 1.5703125
    %v163 = vsub.f32 %v158, %v162
    %v164 = vmul.f32 %v161, 0.0004837513
    %v165 = vsub.f32 %v163, %v164
    %v166 = vmul.f32 %v161, 7.54979e-08
    %v167 = vsub.f32 %v165, %v166
    %v168 = vcvt.f32.s32.to.zero.pseudo %v161
    %v169 = vmul.f32 %v167, %v167
    %v170 = vmul.f32 %v167, %v169
    %v171 = vmul.f32 %v169, -0.00019515296
    %v172 = vadd.f32 %v171, 0.008332161
    %v173 = vmul.f32 %v169, %v172
    %v174 = vadd.f32 %v173, -0.16666655
    %v175 = vmul.f32 %v170, %v174
    %v176 = vadd.f32 %v167, %v175
    %v177 = vmul.f32 %v169, 2.4433157e-05
    %v178 = vadd.f32 %v177, -0.0013887316
    %v179 = vmul.f32 %v169, %v178
    %v180 = vadd.f32 %v179, 0.041666646
    %v181 = vmul.f32 %v169, %v180
    %v182 = vadd.f32 %v181, -0.5
    %v183 = vmul.f32 %v169, %v182
    %v184 = vadd.f32 %v183, 1.0
    %v185 = vand.u32 %v168, 1
    %vm186 = vcmp.eq.s32.totalorder %v185, 1
    %v187 = vsel %vm186, %v184, %v176
    %v188 = vsel %vm186, %v176, %v184
    %v189 = vand.u32 %v168, 2
    %vm190 = vcmp.eq.s32.totalorder %v189, 2
    %v191 = vsub.f32 0.0, %v187
    %v192 = vsel %vm190, %v191, %v187
    %v193 = vadd.s32 %v168, 1
    %v194 = vand.u32 %v193, 2
    %vm195 = vcmp.eq.s32.totalorder %v194, 2
    %v196 = vsub.f32 0.0, %v188
    %v197 = vsel %vm195, %v196, %v188
    %v198 = vld [vmem:[#allocation7] sm:$0xff]
    %v199 = vld [vmem:[#allocation7 + $0x8] sm:$0xff]
    %v200 = vld [vmem:[#allocation7 + $0x10] sm:$0xff]
    %v201 = vld [vmem:[#allocation7 + $0x18] sm:$0xff]
    %v202 = vld [vmem:[#allocation7 + $0x20] sm:$0xff]
    %v203 = vld [vmem:[#allocation7 + $0x28] sm:$0xff]
    %v204 = vld [vmem:[#allocation7 + $0x30] sm:$0xff]
    %v205 = vld [vmem:[#allocation7 + $0x38] sm:$0xff]
    %v206 = vld [vmem:[#allocation7 + $0x40] sm:$0xff]
    %v207 = vld [vmem:[#allocation7 + $0x48] sm:$0xff]
    %v208 = vld [vmem:[#allocation7 + $0x50] sm:$0xff]
    %v209 = vld [vmem:[#allocation7 + $0x58] sm:$0xff]
    %v210 = vld [vmem:[#allocation7 + $0x60] sm:$0xff]
    %v211 = vld [vmem:[#allocation7 + $0x68] sm:$0xff]
    %v212 = vld [vmem:[#allocation7 + $0x70] sm:$0xff]
    %v213 = vld [vmem:[#allocation7 + $0x78] sm:$0xff]
    %v214 = vld [vmem:[#allocation8] sm:$0xff]
    %v215 = vld [vmem:[#allocation8 + $0x8] sm:$0xff]
    %v216 = vld [vmem:[#allocation8 + $0x10] sm:$0xff]
    %v217 = vld [vmem:[#allocation8 + $0x18] sm:$0xff]
    %v218 = vld [vmem:[#allocation8 + $0x20] sm:$0xff]
    %v219 = vld [vmem:[#allocation8 + $0x28] sm:$0xff]
    %v220 = vld [vmem:[#allocation8 + $0x30] sm:$0xff]
    %v221 = vld [vmem:[#allocation8 + $0x38] sm:$0xff]
    %v222 = vld [vmem:[#allocation8 + $0x40] sm:$0xff]
    %v223 = vld [vmem:[#allocation8 + $0x48] sm:$0xff]
    %v224 = vld [vmem:[#allocation8 + $0x50] sm:$0xff]
    %v225 = vld [vmem:[#allocation8 + $0x58] sm:$0xff]
    %v226 = vld [vmem:[#allocation8 + $0x60] sm:$0xff]
    %v227 = vld [vmem:[#allocation8 + $0x68] sm:$0xff]
    %v228 = vld [vmem:[#allocation8 + $0x70] sm:$0xff]
    %v229 = vld [vmem:[#allocation8 + $0x78] sm:$0xff]
    %230 = vmatprep.subr.mxu0 0.0
    %231 = vmatpush1.msra.mxu0 %v229
    %232 = vmatprep.subr.mxu0 0.0
    %233 = vmatpush1.msra.mxu0 %v228
    %234 = vmatprep.subr.mxu0 0.0
    %235 = vmatpush1.msra.mxu0 %v227
    %236 = vmatprep.subr.mxu0 0.0
    %237 = vmatpush1.msra.mxu0 %v226
    %238 = vmatprep.subr.mxu0 0.0
    %239 = vmatpush1.msra.mxu0 %v225
    %240 = vmatprep.subr.mxu0 0.0
    %241 = vmatpush1.msra.mxu0 %v224
    %242 = vmatprep.subr.mxu0 0.0
    %243 = vmatpush1.msra.mxu0 %v223
    %244 = vmatprep.subr.mxu0 0.0
    %245 = vmatpush1.msra.mxu0 %v222
    %246 = vmatprep.subr.mxu0 0.0
    %247 = vmatpush1.msra.mxu0 %v221
    %248 = vmatprep.subr.mxu0 0.0
    %249 = vmatpush1.msra.mxu0 %v220
    %250 = vmatprep.subr.mxu0 0.0
    %251 = vmatpush1.msra.mxu0 %v219
    %252 = vmatprep.subr.mxu0 0.0
    %253 = vmatpush1.msra.mxu0 %v218
    %254 = vmatprep.subr.mxu0 0.0
    %255 = vmatpush1.msra.mxu0 %v217
    %256 = vmatprep.subr.mxu0 0.0
    %257 = vmatpush1.msra.mxu0 %v216
    %258 = vmatprep.subr.mxu0 0.0
    %259 = vmatpush1.msra.mxu0 %v215
    %260 = vmatprep.subr.mxu0 0.0
    %261 = vmatpush1.msra.mxu0 %v214
    %262 = vmatprep.subr.mxu0 0.0
    %263 = vmatpush2.msra.mxu0 0.0
    %264 = vmatprep.subr.mxu0 0.0
    %265 = vmatpush2.msra.mxu0 0.0
    %266 = vmatprep.subr.mxu0 0.0
    %267 = vmatpush2.msra.mxu0 0.0
    %268 = vmatprep.subr.mxu0 0.0
    %269 = vmatpush2.msra.mxu0 0.0
    %270 = vmatprep.subr.mxu0 0.0
    %271 = vmatpush2.msra.mxu0 0.0
    %272 = vmatprep.subr.mxu0 0.0
    %273 = vmatpush2.msra.mxu0 0.0
    %274 = vmatprep.subr.mxu0 0.0
    %275 = vmatpush2.msra.mxu0 0.0
    %276 = vmatprep.subr.mxu0 0.0
    %277 = vmatpush2.msra.mxu0 0.0
    %278 = vmatprep.subr.mxu0 0.0
    %279 = vmatpush2.msra.mxu0 0.0
    %280 = vmatprep.subr.mxu0 0.0
    %281 = vmatpush2.msra.mxu0 0.0
    %282 = vmatprep.subr.mxu0 0.0
    %283 = vmatpush2.msra.mxu0 0.0
    %284 = vmatprep.subr.mxu0 0.0
    %285 = vmatpush2.msra.mxu0 0.0
    %286 = vmatprep.subr.mxu0 0.0
    %287 = vmatpush2.msra.mxu0 0.0
    %288 = vmatprep.subr.mxu0 0.0
    %289 = vmatpush2.msra.mxu0 0.0
    %290 = vmatprep.subr.mxu0 0.0
    %291 = vmatpush2.msra.mxu0 0.0
    %292 = vmatprep.subr.mxu0 0.0
    %293 = vmatpush2.msra.mxu0 0.0
    %294 = vmatprep.mubr.f32.mxu0 0.0
    %295 = vmatmul.mubr.f32.gmra.mxu0 %v197
    %v296 = vpop.f32.mrf.mxu0
    %v297 = vadd.f32 0.0, %v296
    %v298 = vpop.f32.mrf.mxu0
    %299 = vdwg.mxu0
    %300 = vmatprep.subr.mxu0 0.0
    %301 = vmatpush1.msra.mxu0 %v213
    %302 = vmatprep.subr.mxu0 0.0
    %303 = vmatpush1.msra.mxu0 %v212
    %304 = vmatprep.subr.mxu0 0.0
    %305 = vmatpush1.msra.mxu0 %v211
    %306 = vmatprep.subr.mxu0 0.0
    %307 = vmatpush1.msra.mxu0 %v210
    %308 = vmatprep.subr.mxu0 0.0
    %309 = vmatpush1.msra.mxu0 %v209
    %310 = vmatprep.subr.mxu0 0.0
    %311 = vmatpush1.msra.mxu0 %v208
    %312 = vmatprep.subr.mxu0 0.0
    %313 = vmatpush1.msra.mxu0 %v207
    %314 = vmatprep.subr.mxu0 0.0
    %315 = vmatpush1.msra.mxu0 %v206
    %316 = vmatprep.subr.mxu0 0.0
    %317 = vmatpush1.msra.mxu0 %v205
    %318 = vmatprep.subr.mxu0 0.0
    %319 = vmatpush1.msra.mxu0 %v204
    %320 = vmatprep.subr.mxu0 0.0
    %321 = vmatpush1.msra.mxu0 %v203
    %322 = vmatprep.subr.mxu0 0.0
    %323 = vmatpush1.msra.mxu0 %v202
    %324 = vmatprep.subr.mxu0 0.0
    %325 = vmatpush1.msra.mxu0 %v201
    %326 = vmatprep.subr.mxu0 0.0
    %327 = vmatpush1.msra.mxu0 %v200
    %328 = vmatprep.subr.mxu0 0.0
    %329 = vmatpush1.msra.mxu0 %v199
    %330 = vmatprep.subr.mxu0 0.0
    %331 = vmatpush1.msra.mxu0 %v198
    %332 = vmatprep.subr.mxu0 0.0
    %333 = vmatpush2.msra.mxu0 0.0
    %334 = vmatprep.subr.mxu0 0.0
    %335 = vmatpush2.msra.mxu0 0.0
    %336 = vmatprep.subr.mxu0 0.0
    %337 = vmatpush2.msra.mxu0 0.0
    %338 = vmatprep.subr.mxu0 0.0
    %339 = vmatpush2.msra.mxu0 0.0
    %340 = vmatprep.subr.mxu0 0.0
    %341 = vmatpush2.msra.mxu0 0.0
    %342 = vmatprep.subr.mxu0 0.0
    %343 = vmatpush2.msra.mxu0 0.0
    %344 = vmatprep.subr.mxu0 0.0
    %345 = vmatpush2.msra.mxu0 0.0
    %346 = vmatprep.subr.mxu0 0.0
    %347 = vmatpush2.msra.mxu0 0.0
    %348 = vmatprep.subr.mxu0 0.0
    %349 = vmatpush2.msra.mxu0 0.0
    %350 = vmatprep.subr.mxu0 0.0
    %351 = vmatpush2.msra.mxu0 0.0
    %352 = vmatprep.subr.mxu0 0.0
    %353 = vmatpush2.msra.mxu0 0.0
    %354 = vmatprep.subr.mxu0 0.0
    %355 = vmatpush2.msra.mxu0 0.0
    %356 = vmatprep.subr.mxu0 0.0
    %357 = vmatpush2.msra.mxu0 0.0
    %358 = vmatprep.subr.mxu0 0.0
    %359 = vmatpush2.msra.mxu0 0.0
    %360 = vmatprep.subr.mxu0 0.0
    %361 = vmatpush2.msra.mxu0 0.0
    %362 = vmatprep.subr.mxu0 0.0
    %363 = vmatpush2.msra.mxu0 0.0
    %364 = vmatprep.mubr.f32.mxu0 0.0
    %365 = vmatmul.mubr.f32.gmra.mxu0 %v192
    %v366 = vpop.f32.mrf.mxu0
    %v367 = vadd.f32 %v297, %v366
    %v368 = vpop.f32.mrf.mxu0
    %369 = vdwg.mxu0
    %v370 = vld [vmem:[%s5] sm:$0x1]
    %v372 = vlaneseq
    %v373 = vshrl.u32 %v372, 7
    %v374 = vsub.s32 0, %v373
    %v375 = vrot.slane %v370, %v374
    %v377 = vadd.f32 %v367, %v375
    %v378 = vmax.f32 %v377, 0.0
    %379 = vst [vmem:[#allocation10] sm:$0xff] %v378
    // Predicated region
    $region42: #{tpu_custom_call.1} parent=1 // pred_check
      _
    $region43: #{tpu_custom_call.1} parent=1 // pred_check_branch
      %381 = sbr.rel (0) target = $region45
    $region44: #{tpu_custom_call.1} parent=1 // pred_region
      %s383 = ssub.s32 128, 128
      %384 = vsyncadd [#allocation4], %s383
      %s386 = sshll.u32 [#allocation10], 4
      %s387 = int_to_ptr.vmem [resolvable:$true] %s386
      %389 = dma.vmem_to_hbm [thread:$0]  %s387, 128, %s6, [#allocation4]
    $region45: #{tpu_custom_call.1} parent=1 // pred_fallthru
      _
    // Predicated region
    $region46: #{tpu_custom_call.1} parent=1 // pred_check
      _
    $region47: #{tpu_custom_call.1} parent=1 // pred_check_branch
      %391 = sbr.rel (0) target = $region49
    $region48: #{tpu_custom_call.1} parent=1 // pred_region
      %392 = dma.done [#allocation4], 128
    $region49: #{tpu_custom_call.1} parent=1 // pred_fallthru
      _
    %393 = vsyncpa [#allocation3], 1
    %394 = vsyncpa [#allocation6], 1
    %395 = vsyncpa [#allocation9], 1
    %396 = vsyncpa [#allocation4], 1

</llo_original>
